<compile_context>
chip_gen: v6e
topology: v6e:2x2x1
jax: 0.10.0
libtpu: 0.0.40
codegen_flags: <defaults>
</compile_context>

<pallas_src>
import functools

import jax
import jax.numpy as jnp
from jax.experimental import pallas as pl
from jax.experimental.pallas import tpu as pltpu

_MIB = 1024 * 1024


def _attention_kernel(x_ref, w1_ref, b1_ref, w2_ref, enc_ref, alphas_ref,
                      *, seq_valid, batch_total):
    TB, S, H = x_ref.shape
    A = w1_ref.shape[1]

    x = x_ref[...]                                    # [TB, S, H], native dtype

    # --- Projection: one flattened MXU matmul over all (batch, seq) rows. ---
    # Wrapper guarantees S % 8 == 0, so this reshape is a pure view (no VMEM
    # relayout copy competing with the DMA-fed pipeline).
    x2 = x.reshape(TB * S, H)
    proj = jnp.dot(x2, w1_ref[...], preferred_element_type=jnp.float32)
    proj = jnp.maximum(proj + b1_ref[...].astype(jnp.float32), 0.0)   # [TB*S, A]

    # --- Scores: VPU multiply + XLU lane-reduce (no N=1 MXU matmul). --------
    proj3 = proj.reshape(TB, S, A)                    # free view (S % 8 == 0)
    w2_row = w2_ref[...].astype(jnp.float32)          # [1, A]
    scores = jnp.sum(proj3 * w2_row, axis=-1)         # [TB, S] f32
    # b2 intentionally dropped: raw scores are never returned, so a constant
    # shift cancels in the softmax.  Keep this invariant if scores are exposed.

    # Mask sequence positions introduced by the wrapper's sublane padding.
    if S > seq_valid:
        seq_ids = jax.lax.broadcasted_iota(jnp.int32, (TB, S), 1)
        scores = jnp.where(seq_ids < seq_valid, scores, -jnp.inf)
    # Mask batch rows beyond the true batch in the (single) partial last block
    # so uninitialised pad data never reaches exp() (no transient Inf/NaN).
    if batch_total % TB != 0:
        row_ids = (pl.program_id(0) * TB
                   + jax.lax.broadcasted_iota(jnp.int32, (TB, S), 0))
        scores = jnp.where(row_ids < batch_total, scores, 0.0)

    # --- Softmax over the sequence axis (dim=1), exact f32 math. ------------
    m = jnp.max(scores, axis=1, keepdims=True)
    e = jnp.exp(scores - m)
    denom = jnp.sum(e, axis=1, keepdims=True)
    alphas = e / denom                                # exact: alphas are returned

    # --- Weighted encoding: VPU multiply + XLU seq-reduce (no M=1 matmul). --
    # x promotes against f32 alphas per-vreg; accumulation stays f32.
    enc = jnp.sum(x * alphas[:, :, None], axis=1)     # [TB, H] f32

    enc_ref[...] = enc.astype(enc_ref.dtype)
    # NOTE: with S < 128 / H < 128 these stores are masked (lane-sparse) vst;
    # kept as-is to preserve the module's [B, S] / [B, H] output contract.
    alphas_ref[...] = alphas.astype(alphas_ref.dtype)


def _device_vmem_budgets():
    """Returns (per-block working budget, scoped vmem limit) in bytes."""
    kind = ""
    try:
        kind = jax.devices()[0].device_kind.lower()
    except Exception:
        pass
    if "v7" in kind or "7x" in kind:
        # v7x: only 64 MiB physical VMEM per TensorCore -> smaller slab + limit.
        # (3.2 TB/s HBM still amortises the ~0.35us/step overhead at this size.)
        return 10 * _MIB, 40 * _MIB
    if "v6" in kind or "v5" in kind:
        # v5e/v6e: 128 MiB physical VMEM; HBM-bound kernel wants big blocks
        # (~8-9 MiB x slab per buffer after intermediate accounting).
        return 28 * _MIB, 64 * _MIB
    # Unknown generation: assume the tightest (v7x-like) budget.
    return 10 * _MIB, 40 * _MIB


def _select_batch_tile(B, S, H, A, x_itemsize, working_budget, min_steps=4):
    # Per batch row of the block, bytes resident during a pipeline stage:
    per_row = (2 * S * H * x_itemsize        # x tile, double-buffered by BlockSpec
               + S * A * 4                   # f32 proj
               + S * H * 4                   # f32 (x * alphas) temp
               + 4 * S * 4                   # f32 scores / exp / softmax temps
               + 2 * (H + S) * x_itemsize)   # double-buffered outputs
    rows = max(1, int(working_budget) // per_row)
    if B < 16:
        # Tiny batch: single full-extent block (always layout-legal); there is
        # nothing meaningful to overlap or shard at this size.
        return B
    # Guarantee >= min_steps grid steps so DMA/compute overlap and the
    # "parallel" axis can be sharded across v7x's two TensorCores.
    cap = pl.cdiv(B, min_steps)
    bt = min(rows, cap, B)
    bt = max(8, (bt // 8) * 8)               # sublane-aligned leading block dim
    return min(bt, B)


def custom_attention(lstm_outputs, w1, b1, w2, b2=None, *, batch_tile=None):
    """lstm_outputs: [B, S, H]; w1: [H, A]; b1: [A]; w2: [A, 1]; b2: [1].

    b2 is accepted for API parity but unused: it cancels in the softmax and the
    raw scores are not returned.  bf16 lstm_outputs are supported (halves the
    dominant HBM read; math stays f32).
    """
    del b2
    B, S, H = lstm_outputs.shape
    A = w1.shape[1]
    x_itemsize = jnp.dtype(lstm_outputs.dtype).itemsize

    # Sublane-align the sequence axis so the in-kernel [TB,S,H]->[TB*S,H]
    # collapse is a free view (no per-step VMEM relayout).  The pad is a
    # one-time HBM copy; for peak bandwidth the producer should emit S % 8 == 0.
    S_pad = ((S + 7) // 8) * 8
    x_in = lstm_outputs
    if S_pad != S:
        x_in = jnp.pad(lstm_outputs, ((0, 0), (0, S_pad - S), (0, 0)))

    working_budget, vmem_limit = _device_vmem_budgets()
    if batch_tile is None:
        batch_tile = _select_batch_tile(B, S_pad, H, A, x_itemsize, working_budget)
    batch_tile = int(max(1, min(batch_tile, B)))
    grid = (pl.cdiv(B, batch_tile),)

    b1_2d = b1.reshape(1, A)
    w2_row = w2.reshape(1, A)                         # [A, 1] -> broadcastable row

    kernel = functools.partial(_attention_kernel, seq_valid=S, batch_total=B)

    flops = 2 * B * S_pad * H * A + 2 * B * S_pad * A + 2 * B * S_pad * H
    bytes_accessed = (B * S_pad * H * x_itemsize                          # x
                      + (H * A + 2 * A) * jnp.dtype(w1.dtype).itemsize    # params
                      + (B * H + B * S_pad) * x_itemsize)                 # outputs

    enc, alphas = pl.pallas_call(
        kernel,
        out_shape=(
            jax.ShapeDtypeStruct((B, H), lstm_outputs.dtype),
            jax.ShapeDtypeStruct((B, S_pad), lstm_outputs.dtype),
        ),
        grid_spec=pltpu.PrefetchScalarGridSpec(
            num_scalar_prefetch=0,
            grid=grid,
            in_specs=[
                pl.BlockSpec((batch_tile, S_pad, H), lambda i: (i, 0, 0)),  # x tile
                pl.BlockSpec((H, A), lambda i: (0, 0)),                     # w1
                pl.BlockSpec((1, A), lambda i: (0, 0)),                     # b1
                pl.BlockSpec((1, A), lambda i: (0, 0)),                     # w2 row
            ],
            out_specs=(
                pl.BlockSpec((batch_tile, H), lambda i: (i, 0)),            # enc
                pl.BlockSpec((batch_tile, S_pad), lambda i: (i, 0)),        # alphas
            ),
        ),
        compiler_params=pltpu.CompilerParams(
            # Batch tiles are independent -> megacore / v7x dual-TC sharding.
            dimension_semantics=("parallel",),
            vmem_limit_bytes=vmem_limit,
        ),
        cost_estimate=pl.CostEstimate(
            flops=flops, transcendentals=B * S_pad, bytes_accessed=bytes_accessed),
    )(x_in, w1, b1_2d, w2_row)

    if S_pad != S:
        alphas = alphas[:, :S]
    return enc, alphas


def _reference(lstm_outputs, w1, b1, w2, b2):
    proj = jnp.maximum(lstm_outputs @ w1 + b1, 0.0)
    scores = (proj @ w2)[..., 0] + b2[0]
    alphas = jax.nn.softmax(scores, axis=1)
    enc = jnp.sum(lstm_outputs * alphas[:, :, None], axis=1)
    return enc, alphas


if __name__ == "__main__":
    B, S, H, A = 2, 8, 32, 16   # batch, seq_len, num_hiddens, attention_dim

    key = jax.random.PRNGKey(0)
    kx, kw1, kb1, kw2, kb2 = jax.random.split(key, 5)

    lstm_outputs = jax.random.normal(kx, (B, S, H), dtype=jnp.float32)
    # nn.Linear params (weight [out, in], bias [out]) stored transposed [in, out].
    w1 = jax.random.normal(kw1, (H, A), dtype=jnp.float32) * 0.1
    b1 = jax.random.normal(kb1, (A,), dtype=jnp.float32) * 0.1
    w2 = jax.random.normal(kw2, (A, 1), dtype=jnp.float32) * 0.1
    b2 = jax.random.normal(kb2, (1,), dtype=jnp.float32) * 0.1

    enc, alphas = custom_attention(lstm_outputs, w1, b1, w2, b2)
    jax.block_until_ready((enc, alphas))

    enc_ref, alphas_ref = _reference(lstm_outputs, w1, b1, w2, b2)
    assert jnp.allclose(enc, enc_ref, atol=1e-4, rtol=1e-4)
    assert jnp.allclose(alphas, alphas_ref, atol=1e-4, rtol=1e-4)

    print("KERNEL_OK")
</pallas_src>

<mosaic_0001>
module attributes {stable_mosaic.version = 11 : i64} {
  func.func @_attention_kernel(%arg0: i32, %arg1: memref<2x8x32xf32, #tpu.memory_space<vmem>>, %arg2: memref<32x16xf32, #tpu.memory_space<vmem>>, %arg3: memref<1x16xf32, #tpu.memory_space<vmem>>, %arg4: memref<1x16xf32, #tpu.memory_space<vmem>>, %arg5: memref<2x32xf32, #tpu.memory_space<vmem>>, %arg6: memref<2x8xf32, #tpu.memory_space<vmem>>) attributes {dimension_semantics = [#tpu.dimension_semantics<parallel>], iteration_bounds = array<i64: 1>, scalar_prefetch = 0 : i64, scratch_operands = 0 : i64, tpu.core_type = #tpu.core_type<tc>, window_params = [{transform_indices = @transform_0, window_bounds = array<i64: 2, 8, 32>}, {pipeline_mode = #tpu.pipeline_mode<synchronous>, transform_indices = @transform_1, window_bounds = array<i64: 32, 16>}, {pipeline_mode = #tpu.pipeline_mode<synchronous>, transform_indices = @transform_2, window_bounds = array<i64: 1, 16>}, {pipeline_mode = #tpu.pipeline_mode<synchronous>, transform_indices = @transform_3, window_bounds = array<i64: 1, 16>}, {transform_indices = @transform_4, window_bounds = array<i64: 2, 32>}, {transform_indices = @transform_5, window_bounds = array<i64: 2, 8>}]} {
    %c0 = arith.constant 0 : index
    %c0_0 = arith.constant 0 : index
    %c0_1 = arith.constant 0 : index
    %0 = vector.load %arg1[%c0, %c0_0, %c0_1] : memref<2x8x32xf32, #tpu.memory_space<vmem>>, vector<2x8x32xf32>
    %1 = vector.shape_cast %0 : vector<2x8x32xf32> to vector<16x32xf32>
    %c0_2 = arith.constant 0 : index
    %c0_3 = arith.constant 0 : index
    %2 = vector.load %arg2[%c0_2, %c0_3] : memref<32x16xf32, #tpu.memory_space<vmem>>, vector<32x16xf32>
    %cst = arith.constant dense<0.000000e+00> : vector<16x16xf32>
    %3 = tpu.matmul %1, %2, %cst {dimension_numbers = #tpu.dot_dimension_numbers<[1], [0], [0], [1], [0, 0, 1, 1], [], []>} : vector<16x32xf32>, vector<32x16xf32>, vector<16x16xf32> -> vector<16x16xf32>
    %c0_4 = arith.constant 0 : index
    %c0_5 = arith.constant 0 : index
    %4 = vector.load %arg3[%c0_4, %c0_5] : memref<1x16xf32, #tpu.memory_space<vmem>>, vector<1x16xf32>
    %5 = vector.broadcast %4 : vector<1x16xf32> to vector<16x16xf32>
    %6 = arith.addf %3, %5 : vector<16x16xf32>
    %cst_6 = arith.constant 0.000000e+00 : f32
    %7 = vector.broadcast %cst_6 : f32 to vector<16x16xf32>
    %8 = arith.maximumf %6, %7 : vector<16x16xf32>
    %9 = vector.shape_cast %8 : vector<16x16xf32> to vector<2x8x16xf32>
    %c0_7 = arith.constant 0 : index
    %c0_8 = arith.constant 0 : index
    %10 = vector.load %arg4[%c0_7, %c0_8] : memref<1x16xf32, #tpu.memory_space<vmem>>, vector<1x16xf32>
    %11 = vector.shape_cast %10 : vector<1x16xf32> to vector<1x1x16xf32>
    %12 = vector.broadcast %11 : vector<1x1x16xf32> to vector<2x8x16xf32>
    %13 = arith.mulf %9, %12 : vector<2x8x16xf32>
    %cst_9 = arith.constant dense<0.000000e+00> : vector<2x8xf32>
    %14 = vector.multi_reduction <add>, %13, %cst_9 [2] : vector<2x8x16xf32> to vector<2x8xf32>
    %cst_10 = arith.constant dense<0xFF800000> : vector<2xf32>
    %15 = vector.multi_reduction <maximumf>, %14, %cst_10 [1] : vector<2x8xf32> to vector<2xf32>
    %16 = vector.shape_cast %15 : vector<2xf32> to vector<2x1xf32>
    %17 = vector.broadcast %16 : vector<2x1xf32> to vector<2x8xf32>
    %18 = arith.subf %14, %17 : vector<2x8xf32>
    %19 = math.exp %18 : vector<2x8xf32>
    %cst_11 = arith.constant dense<0.000000e+00> : vector<2xf32>
    %20 = vector.multi_reduction <add>, %19, %cst_11 [1] : vector<2x8xf32> to vector<2xf32>
    %21 = vector.shape_cast %20 : vector<2xf32> to vector<2x1xf32>
    %22 = vector.broadcast %21 : vector<2x1xf32> to vector<2x8xf32>
    %23 = arith.divf %19, %22 : vector<2x8xf32>
    %24 = vector.shape_cast %23 : vector<2x8xf32> to vector<2x8x1xf32>
    %25 = vector.broadcast %24 : vector<2x8x1xf32> to vector<2x8x32xf32>
    %26 = arith.mulf %0, %25 : vector<2x8x32xf32>
    %cst_12 = arith.constant dense<0.000000e+00> : vector<2x32xf32>
    %27 = vector.multi_reduction <add>, %26, %cst_12 [1] : vector<2x8x32xf32> to vector<2x32xf32>
    %c0_13 = arith.constant 0 : index
    %c0_14 = arith.constant 0 : index
    %28 = vector.load %arg5[%c0_13, %c0_14] : memref<2x32xf32, #tpu.memory_space<vmem>>, vector<2x32xf32>
    tpu.vector_store %arg5[%c0_13, %c0_14], %27 {strides = array<i32>} : memref<2x32xf32, #tpu.memory_space<vmem>>, vector<2x32xf32>,
    %c0_15 = arith.constant 0 : index
    %c0_16 = arith.constant 0 : index
    %29 = vector.load %arg6[%c0_15, %c0_16] : memref<2x8xf32, #tpu.memory_space<vmem>>, vector<2x8xf32>
    tpu.vector_store %arg6[%c0_15, %c0_16], %23 {strides = array<i32>} : memref<2x8xf32, #tpu.memory_space<vmem>>, vector<2x8xf32>,
    return
  }
  func.func @transform_0(%arg0: i32) -> (i32, i32, i32) {
    %c0_i32 = arith.constant 0 : i32
    %c0_i32_0 = arith.constant 0 : i32
    %c0_i32_1 = arith.constant 0 : i32
    return %arg0, %c0_i32, %c0_i32_0 : i32, i32, i32
  }
  func.func @transform_1(%arg0: i32) -> (i32, i32) {
    %c0_i32 = arith.constant 0 : i32
    %c0_i32_0 = arith.constant 0 : i32
    %c0_i32_1 = arith.constant 0 : i32
    return %c0_i32, %c0_i32_0 : i32, i32
  }
  func.func @transform_2(%arg0: i32) -> (i32, i32) {
    %c0_i32 = arith.constant 0 : i32
    %c0_i32_0 = arith.constant 0 : i32
    %c0_i32_1 = arith.constant 0 : i32
    return %c0_i32, %c0_i32_0 : i32, i32
  }
  func.func @transform_3(%arg0: i32) -> (i32, i32) {
    %c0_i32 = arith.constant 0 : i32
    %c0_i32_0 = arith.constant 0 : i32
    %c0_i32_1 = arith.constant 0 : i32
    return %c0_i32, %c0_i32_0 : i32, i32
  }
  func.func @transform_4(%arg0: i32) -> (i32, i32) {
    %c0_i32 = arith.constant 0 : i32
    %c0_i32_0 = arith.constant 0 : i32
    return %arg0, %c0_i32 : i32, i32
  }
  func.func @transform_5(%arg0: i32) -> (i32, i32) {
    %c0_i32 = arith.constant 0 : i32
    %c0_i32_0 = arith.constant 0 : i32
    return %arg0, %c0_i32 : i32, i32
  }
}

</mosaic_0001>

<llo_original>
// kernel: tpu_custom_call.1
$region0: #{tpu_custom_call.1}
  #allocation0 [shape = 'u32[]', space=smem, size = 0x4, offset = 0x4, fixed_abs, tag = 'smem constant byte address 0x4 - core index']
  #allocation1 [shape = 'u32[144,128]{1,0:T(1,128)}', space=vmem, size = 0x12000, scoped, tag = 'internal scratch']
  %s0 = inlined_call_operand.vmem [shape: f32[2,8,32], index: 0, kind: input, shape index: {}]
  %s1 = inlined_call_operand.vmem [shape: f32[32,16], index: 1, kind: input, shape index: {}]
  %s2 = inlined_call_operand.vmem [shape: f32[1,16], index: 2, kind: input, shape index: {}]
  %s3 = inlined_call_operand.vmem [shape: f32[1,16], index: 3, kind: input, shape index: {}]
  %s4 = inlined_call_operand.hbm [shape: f32[2,32], index: 4, kind: output, shape index: {0}]
  %s5 = inlined_call_operand.hbm [shape: f32[2,8], index: 5, kind: output, shape index: {1}]
  %6 = xla_tuple %s4, %s5
  %s7 = sld [smem:[#allocation0]]
  $region34: #{tpu_custom_call.1} parent=0
    _
  %s9 = ssub.s32 1, %s7
  %s10 = scalar_select 0, %s9, %s7
  $region1: #{tpu_custom_call.1} parent=0
    #allocation2 [shape = 'u8[1024]{0}', space=vmem, size = 0x400, scoped, tag = 'output window, operand 0, single buffered']
    #allocation3 [shape = 's32[1]{0}', space=sflag, size = 0x4, scoped, tag = 'scoped memory for tpu_custom_call.1']
    #allocation4 [shape = 'u8[1024]{0}', space=vmem, size = 0x400, scoped, tag = 'output window, operand 1, single buffered']
    #allocation5 [shape = 's32[1]{0}', space=sflag, size = 0x4, scoped, tag = 'scoped memory for tpu_custom_call.1']
    %11 = vsyncpa [#allocation3], 0
    %12 = vsyncpa [#allocation5], 0
    // Predicated region
    $region2: #{tpu_custom_call.1} parent=1 // pred_check
      _
    $region3: #{tpu_custom_call.1} parent=1 // pred_check_branch
      %14 = sbr.rel (0) target = $region5
    $region4: #{tpu_custom_call.1} parent=1 // pred_region
      _
    $region5: #{tpu_custom_call.1} parent=1 // pred_fallthru
      _
    // Predicated region
    $region6: #{tpu_custom_call.1} parent=1 // pred_check
      _
    $region7: #{tpu_custom_call.1} parent=1 // pred_check_branch
      %16 = sbr.rel (0) target = $region9
    $region8: #{tpu_custom_call.1} parent=1 // pred_region
      _
    $region9: #{tpu_custom_call.1} parent=1 // pred_fallthru
      _
    // Predicated region
    $region10: #{tpu_custom_call.1} parent=1 // pred_check
      _
    $region11: #{tpu_custom_call.1} parent=1 // pred_check_branch
      %18 = sbr.rel (0) target = $region13
    $region12: #{tpu_custom_call.1} parent=1 // pred_region
      _
    $region13: #{tpu_custom_call.1} parent=1 // pred_fallthru
      _
    // Predicated region
    $region14: #{tpu_custom_call.1} parent=1 // pred_check
      _
    $region15: #{tpu_custom_call.1} parent=1 // pred_check_branch
      %20 = sbr.rel (0) target = $region17
    $region16: #{tpu_custom_call.1} parent=1 // pred_region
      _
    $region17: #{tpu_custom_call.1} parent=1 // pred_fallthru
      _
    %v21 = vld [vmem:[%s0] sm:$0xff]
    %v22 = vld [vmem:[%s0 + $0x8] sm:$0xff]
    %v23 = vld [vmem:[%s1] sm:$0xff]
    %v24 = vld [vmem:[%s1 + $0x8] sm:$0xff]
    %v25 = vld [vmem:[%s1 + $0x10] sm:$0xff]
    %v26 = vld [vmem:[%s1 + $0x18] sm:$0xff]
    %v27 = vld [vmem:[%s2] sm:$0x1]
    %v29 = vlaneseq
    %v30 = vshrl.u32 %v29, 7
    %v31 = vsub.s32 0, %v30
    %v32 = vrot.slane %v27, %v31
    %vm34 = vcmask 261120
    %v36 = vsel %vm34, %v21, 0
    %v39 = vsel %vm34, %v22, 0
    %41 = vmatprep.subr.mxu0 0.0
    %42 = vmatpush1.msra.mxu0 0.0
    %43 = vmatprep.subr.mxu0 0.0
    %44 = vmatpush1.msra.mxu0 0.0
    %45 = vmatprep.subr.mxu0 0.0
    %46 = vmatpush1.msra.mxu0 0.0
    %47 = vmatprep.subr.mxu0 0.0
    %48 = vmatpush1.msra.mxu0 0.0
    %49 = vmatprep.subr.mxu0 0.0
    %50 = vmatpush1.msra.mxu0 0.0
    %51 = vmatprep.subr.mxu0 0.0
    %52 = vmatpush1.msra.mxu0 0.0
    %53 = vmatprep.subr.mxu0 0.0
    %54 = vmatpush1.msra.mxu0 0.0
    %55 = vmatprep.subr.mxu0 0.0
    %56 = vmatpush1.msra.mxu0 0.0
    %57 = vmatprep.subr.mxu0 0.0
    %58 = vmatpush1.msra.mxu0 0.0
    %59 = vmatprep.subr.mxu0 0.0
    %60 = vmatpush1.msra.mxu0 0.0
    %61 = vmatprep.subr.mxu0 0.0
    %62 = vmatpush1.msra.mxu0 0.0
    %63 = vmatprep.subr.mxu0 0.0
    %64 = vmatpush1.msra.mxu0 0.0
    %65 = vmatprep.subr.mxu0 0.0
    %66 = vmatpush1.msra.mxu0 %v26
    %67 = vmatprep.subr.mxu0 0.0
    %68 = vmatpush1.msra.mxu0 %v25
    %69 = vmatprep.subr.mxu0 0.0
    %70 = vmatpush1.msra.mxu0 %v24
    %71 = vmatprep.subr.mxu0 0.0
    %72 = vmatpush1.msra.mxu0 %v23
    %73 = vmatprep.subr.mxu0 0.0
    %74 = vmatpush2.msra.mxu0 0.0
    %75 = vmatprep.subr.mxu0 0.0
    %76 = vmatpush2.msra.mxu0 0.0
    %77 = vmatprep.subr.mxu0 0.0
    %78 = vmatpush2.msra.mxu0 0.0
    %79 = vmatprep.subr.mxu0 0.0
    %80 = vmatpush2.msra.mxu0 0.0
    %81 = vmatprep.subr.mxu0 0.0
    %82 = vmatpush2.msra.mxu0 0.0
    %83 = vmatprep.subr.mxu0 0.0
    %84 = vmatpush2.msra.mxu0 0.0
    %85 = vmatprep.subr.mxu0 0.0
    %86 = vmatpush2.msra.mxu0 0.0
    %87 = vmatprep.subr.mxu0 0.0
    %88 = vmatpush2.msra.mxu0 0.0
    %89 = vmatprep.subr.mxu0 0.0
    %90 = vmatpush2.msra.mxu0 0.0
    %91 = vmatprep.subr.mxu0 0.0
    %92 = vmatpush2.msra.mxu0 0.0
    %93 = vmatprep.subr.mxu0 0.0
    %94 = vmatpush2.msra.mxu0 0.0
    %95 = vmatprep.subr.mxu0 0.0
    %96 = vmatpush2.msra.mxu0 0.0
    %97 = vmatprep.subr.mxu0 0.0
    %98 = vmatpush2.msra.mxu0 0.0
    %99 = vmatprep.subr.mxu0 0.0
    %100 = vmatpush2.msra.mxu0 0.0
    %101 = vmatprep.subr.mxu0 0.0
    %102 = vmatpush2.msra.mxu0 0.0
    %103 = vmatprep.subr.mxu0 0.0
    %104 = vmatpush2.msra.mxu0 0.0
    %105 = vmatprep.mubr.f32.mxu0 0.0
    %106 = vmatmul.mubr.f32.gmra.mxu0 %v36
    %v107 = vpop.f32.mrf.mxu0
    %v108 = vadd.f32 %v32, %v107
    %v109 = vpop.f32.mrf.mxu0
    %110 = vmatprep.mubr.f32.mxu0 0.0
    %111 = vmatmul.mubr.f32.gmra.mxu0 %v39
    %v112 = vpop.f32.mrf.mxu0
    %v113 = vadd.f32 %v32, %v112
    %v114 = vpop.f32.mrf.mxu0
    %115 = vdwg.mxu0
    %v116 = vmax.f32 %v108, 0.0
    %v117 = vmax.f32 %v113, 0.0
    %v118 = vld [vmem:[%s3] sm:$0x1]
    %v120 = vlaneseq
    %v121 = vshrl.u32 %v120, 7
    %v122 = vsub.s32 0, %v121
    %v123 = vrot.slane %v118, %v122
    %v125 = vmul.f32 %v116, %v123
    %v126 = vmul.f32 %v117, %v123
    %vm127 = vcmask 130048
    %v128 = vsel %vm127, %v125, 0.0
    %129 = vadd.xlane.f32.xlu0 %v128
    %v130 = vpop.xlane.xlu0 %129
    %v131 = vsel %vm127, %v126, 0.0
    %132 = vadd.xlane.f32.xlu0 %v131
    %v133 = vpop.xlane.xlu0 %132
    %v136 = vlaneseq
    %v137 = vand.u32 %v136, 127
    %v138 = vlaneseq
    %v139 = vshrl.u32 %v138, 7
    %v140 = vsub.s32 %v137, %v139
    %v141 = vrot.slane %v130, %v140
    %v142 = vlaneseq
    %v143 = vshrl.u32 %v142, 7
    %v144 = vsub.s32 %v137, %v143
    %v145 = vrot.slane %v133, %v144
    %vm146 = vcmask 1041409
    %v147 = vsel %vm146, %v145, %v141
    %vm149 = vcmask 58368
    %v150 = vsel %vm149, %v147, -inf
    %151 = vmax.xlane.f32.xlu0 %v150
    %v152 = vpop.xlane.xlu0 %151
    %v154 = vlaneseq
    %v155 = vshrl.u32 %v154, 7
    %v156 = vsub.s32 0, %v155
    %v157 = vrot.slane %v152, %v156
    %v158 = vlaneseq
    %v159 = vshrl.u32 %v158, 7
    %v160 = vsub.s32 1, %v159
    %v161 = vrot.slane %v152, %v160
    %v164 = vsub.f32 %v130, %v157
    %v165 = vsub.f32 %v133, %v161
    %v166 = vmul.f32 %v164, 1.442695
    %v167 = vpow.pop %v166
    %v168 = vmul.f32 %v165, 1.442695
    %v169 = vpow.pop %v168
    %172 = vset.pattern.permute.xlu0 0
    %173 = vperm.xlu0 %172, %v167
    %v174 = vpop.permute.xlu0 %173
    %175 = vset.pattern.permute.xlu0 0
    %176 = vperm.xlu0 %175, %v169
    %v177 = vpop.permute.xlu0 %176
    %v178 = vlaneseq
    %v179 = vshrl.u32 %v178, 7
    %v180 = vsub.s32 %v137, %v179
    %v181 = vrot.slane %v174, %v180
    %v182 = vlaneseq
    %v183 = vshrl.u32 %v182, 7
    %v184 = vsub.s32 %v137, %v183
    %v185 = vrot.slane %v177, %v184
    %v186 = vsel %vm146, %v185, %v181
    %v188 = vsel %vm149, %v186, 0.0
    %189 = vadd.xlane.f32.xlu0 %v188
    %v190 = vpop.xlane.xlu0 %189
    %v192 = vlaneseq
    %v193 = vshrl.u32 %v192, 7
    %v194 = vsub.s32 0, %v193
    %v195 = vrot.slane %v190, %v194
    %v196 = vlaneseq
    %v197 = vshrl.u32 %v196, 7
    %v198 = vsub.s32 1, %v197
    %v199 = vrot.slane %v190, %v198
    %v202 = vrcp.pop %v195
    %v203 = vmul.f32 %v167, %v202
    %v204 = vrcp.pop %v199
    %v205 = vmul.f32 %v169, %v204
    %207 = vset.pattern.permute.xlu0 0
    %208 = vperm.xlu0 %207, %v203
    %v209 = vpop.permute.xlu0 %208
    %212 = vset.pattern.permute.xlu0 0
    %213 = vperm.xlu0 %212, %v205
    %v214 = vpop.permute.xlu0 %213
    %v216 = vmul.f32 %v21, %v209
    %v217 = vmul.f32 %v22, %v214
    %v218 = vsel %vm34, %v216, 0.0
    %v219 = vrot.slane %v218, 4
    %v220 = vadd.f32 %v218, %v219
    %v221 = vrot.slane %v220, 2
    %v222 = vadd.f32 %v220, %v221
    %v223 = vrot.slane %v222, 1
    %v224 = vadd.f32 %v222, %v223
    %v225 = vsel %vm34, %v217, 0.0
    %v226 = vrot.slane %v225, 4
    %v227 = vadd.f32 %v225, %v226
    %v228 = vrot.slane %v227, 2
    %v229 = vadd.f32 %v227, %v228
    %v230 = vrot.slane %v229, 1
    %v231 = vadd.f32 %v229, %v230
    %v234 = vsel %vm146, %v231, %v224
    %vm236 = vcmask 254976
    %237 = vst.msk [vmem:[#allocation2] sm:$0x3] %vm236, %v234
    %v238 = vlaneseq
    %v239 = vshrl.u32 %v238, 7
    %v240 = vsub.s32 %v137, %v239
    %v241 = vrot.slane %v209, %v240
    %v242 = vlaneseq
    %v243 = vshrl.u32 %v242, 7
    %v244 = vsub.s32 %v137, %v243
    %v245 = vrot.slane %v214, %v244
    %v246 = vsel %vm146, %v245, %v241
    %248 = vst.msk [vmem:[#allocation4] sm:$0x3] %vm149, %v246
    // Predicated region
    $region18: #{tpu_custom_call.1} parent=1 // pred_check
      _
    $region19: #{tpu_custom_call.1} parent=1 // pred_check_branch
      %250 = sbr.rel (0) target = $region21
    $region20: #{tpu_custom_call.1} parent=1 // pred_region
      %s252 = ssub.s32 32, 32
      %253 = vsyncadd [#allocation3], %s252
      %s255 = sshll.u32 [#allocation2], 4
      %s256 = int_to_ptr.vmem [resolvable:$true] %s255
      %258 = dma.vmem_to_hbm [thread:$0]  %s256, 32, %s4, [#allocation3]
    $region21: #{tpu_custom_call.1} parent=1 // pred_fallthru
      _
    // Predicated region
    $region22: #{tpu_custom_call.1} parent=1 // pred_check
      _
    $region23: #{tpu_custom_call.1} parent=1 // pred_check_branch
      %260 = sbr.rel (0) target = $region25
    $region24: #{tpu_custom_call.1} parent=1 // pred_region
      %s262 = ssub.s32 32, 32
      %263 = vsyncadd [#allocation5], %s262
      %s265 = sshll.u32 [#allocation4], 4
      %s266 = int_to_ptr.vmem [resolvable:$true] %s265
      %268 = dma.vmem_to_hbm [thread:$0]  %s266, 32, %s5, [#allocation5]
    $region25: #{tpu_custom_call.1} parent=1 // pred_fallthru
      _
    // Predicated region
    $region26: #{tpu_custom_call.1} parent=1 // pred_check
      _
    $region27: #{tpu_custom_call.1} parent=1 // pred_check_branch
      %270 = sbr.rel (0) target = $region29
    $region28: #{tpu_custom_call.1} parent=1 // pred_region
      %271 = dma.done [#allocation3], 32
    $region29: #{tpu_custom_call.1} parent=1 // pred_fallthru
      _
    // Predicated region
    $region30: #{tpu_custom_call.1} parent=1 // pred_check
      _
    $region31: #{tpu_custom_call.1} parent=1 // pred_check_branch
      %273 = sbr.rel (0) target = $region33
    $region32: #{tpu_custom_call.1} parent=1 // pred_region
      %274 = dma.done [#allocation5], 32
    $region33: #{tpu_custom_call.1} parent=1 // pred_fallthru
      _
    %275 = vsyncpa [#allocation3], 1
    %276 = vsyncpa [#allocation5], 1

</llo_original>
